<compile_context>
chip_gen: v5e
topology: v5e:2x2
jax: 0.10.0
libtpu: 0.0.40
codegen_flags: <defaults>
</compile_context>

<pallas_src>
import functools

import jax
import jax.numpy as jnp
from jax.experimental import pallas as pl
from jax.experimental.pallas import tpu as pltpu


def _cdiv(a, b):
    return -(-a // b)


def _round_up(x, m):
    return _cdiv(x, m) * m


def _vmem_capacity_bytes():
    """Best-effort per-core VMEM query; conservative fallback (v7x: 64 MiB)."""
    try:
        return int(pltpu.get_tpu_info().vmem_capacity_bytes)
    except Exception:
        return 64 * 1024 * 1024


def _vmem_plan():
    """Returns (stream_budget_bytes, vmem_limit_bytes).

    Clamped so the plan is valid on every generation (v7x has only 64 MiB per
    TensorCore); the tiles it yields already sit on the HBM roofline, so the
    extra v5e/v6e VMEM (128 MiB) would buy <2%.
    """
    cap = _vmem_capacity_bytes()
    cap = max(32 << 20, min(cap, 128 << 20))
    vmem_limit = min(int(cap * 0.75), 56 << 20)     # > default scoped 16/32 MiB
    stream_budget = min(int(cap * 0.45), 40 << 20)  # double-buffered x/out streams
    return stream_budget, vmem_limit


def _fold_affine(params):
    """Compose the affine chain in f32: returns W_eff (D, out), b_eff (1, out)."""
    w_eff = params[0][0].astype(jnp.float32)
    b_eff = params[0][1].astype(jnp.float32).reshape(1, -1)
    for w, b in params[1:]:
        w = w.astype(jnp.float32)
        b = b.astype(jnp.float32).reshape(1, -1)
        w_eff = jnp.dot(w_eff, w, precision=jax.lax.Precision.HIGHEST)
        b_eff = jnp.dot(b_eff, w, precision=jax.lax.Precision.HIGHEST) + b
    return w_eff, b_eff


# ---------------------------------------------------------------------------
# Kernels
# ---------------------------------------------------------------------------

def _folded_packed_kernel(x_ref, w_ref, b_ref, out_ref):
    """Folded MLP on lane-packed rows.

    x_ref:   (TP, 128)        g = 128//D original rows packed per lane-row
    w_ref:   (128, g*out_dim) block-diagonal folded weights (f32, resident)
    b_ref:   (1,   g*out_dim) folded bias, tiled per packed row (f32, resident)
    out_ref: (TP,  g*out_dim) sigmoid(x @ W_eff + b) per original row
    """
    x = x_ref[...]
    if x.dtype != jnp.float32:
        x = x.astype(jnp.float32)
    acc = jnp.dot(x, w_ref[...], preferred_element_type=jnp.float32)
    out_ref[...] = jax.nn.sigmoid(acc + b_ref[...]).astype(out_ref.dtype)


def _layered_kernel(num_linear, *refs):
    """General fallback: refs = (x, W0, b0, ..., W_{L-1}, b_{L-1}, out)."""
    x_ref = refs[0]
    out_ref = refs[-1]
    prefs = refs[1:-1]
    h = x_ref[...]
    if h.dtype != jnp.float32:
        h = h.astype(jnp.float32)
    for i in range(num_linear):
        w = prefs[2 * i][...]        # (in, out)  f32, resident
        b = prefs[2 * i + 1][...]    # (1,  out)  f32, resident
        h = jnp.dot(h, w, preferred_element_type=jnp.float32) + b
        # Dropout between linears is identity at inference time.
    out_ref[...] = jax.nn.sigmoid(h).astype(out_ref.dtype)


# ---------------------------------------------------------------------------
# Wrappers
# ---------------------------------------------------------------------------

def _forward_folded_packed(x, params, batch, in_dim, out_dim,
                           stream_budget, vmem_limit, max_rows_per_step):
    g = 128 // in_dim
    n_out = g * out_dim

    # Fold the whole layer chain in f32 and expand to a block-diagonal weight
    # so one matmul handles all g packed rows: W_blk[j*D+d, j*out+o] = W_eff[d,o].
    w_eff, b_eff = _fold_affine(params)                        # (D, out), (1, out)
    eye = jnp.eye(g, dtype=jnp.float32)
    w_blk = (eye[:, None, :, None] * w_eff[None, :, None, :]).reshape(
        g * in_dim, n_out)                                     # (128, g*out)
    b_blk = jnp.tile(b_eff, (1, g))                            # (1, g*out)

    # Packed-row tile from the VMEM budget (double-buffered x + out streams).
    x_bytes = x.dtype.itemsize
    per_packed_row = 2 * 128 * x_bytes + 2 * n_out * 4
    p_rows = _cdiv(batch, g)
    tp = stream_budget // per_packed_row
    tp = min(tp, max(8, max_rows_per_step // g))
    # Keep >= 2 grid steps so v7x's two TensorCores both get work.
    tp = min(tp, _round_up(_cdiv(_round_up(p_rows, 8), 2), 8))
    tp = max(8, (tp // 8) * 8)

    p_padded = _round_up(p_rows, tp)
    padded_batch = p_padded * g
    if padded_batch != batch:
        x = jnp.pad(x, ((0, padded_batch - batch), (0, 0)))
    x_packed = x.reshape(p_padded, 128)        # free, contiguous reshape
    num_tiles = p_padded // tp

    out = pl.pallas_call(
        _folded_packed_kernel,
        grid=(num_tiles,),
        in_specs=[
            pl.BlockSpec((tp, 128), lambda i: (i, 0)),              # streamed x
            pl.BlockSpec((g * in_dim, n_out), lambda i: (0, 0)),    # resident W
            pl.BlockSpec((1, n_out), lambda i: (0, 0)),             # resident b
        ],
        out_specs=pl.BlockSpec((tp, n_out), lambda i: (i, 0)),
        out_shape=jax.ShapeDtypeStruct((p_padded, n_out), x.dtype),
        compiler_params=pltpu.CompilerParams(
            dimension_semantics=("parallel",),
            vmem_limit_bytes=vmem_limit),
    )(x_packed, w_blk, b_blk)

    return out.reshape(padded_batch, out_dim)[:batch]


def _forward_layered(x, params, batch, in_dim, out_dim,
                     stream_budget, vmem_limit, max_rows_per_step):
    num_linear = len(params)
    x_bytes = x.dtype.itemsize

    flat_params = []
    layer_out_dims = []
    for w, b in params:
        flat_params.append(w.astype(jnp.float32))
        flat_params.append(b.astype(jnp.float32).reshape(1, -1))
        layer_out_dims.append(w.shape[1])

    def lane_row_bytes(dim, itemsize):
        # VMEM footprint per row with lane padding to a multiple of 128.
        return _round_up(max(dim, 1), 128) * itemsize

    per_row = (2 * lane_row_bytes(in_dim, x_bytes)
               + 2 * lane_row_bytes(out_dim, 4)
               + sum(lane_row_bytes(d, 4) for d in layer_out_dims))
    tb = stream_budget // per_row
    tb = min(tb, 4096, max_rows_per_step)
    tb = min(tb, _round_up(_cdiv(_round_up(batch, 8), 2), 8))  # >= 2 grid steps
    tb = max(8, (tb // 8) * 8)

    padded_batch = _round_up(batch, tb)
    if padded_batch != batch:
        x = jnp.pad(x, ((0, padded_batch - batch), (0, 0)))
    num_tiles = padded_batch // tb

    in_specs = [pl.BlockSpec((tb, in_dim), lambda i: (i, 0))]
    for p in flat_params:
        in_specs.append(pl.BlockSpec(p.shape, lambda i: (0, 0)))   # resident

    kernel = functools.partial(_layered_kernel, num_linear)
    out = pl.pallas_call(
        kernel,
        grid=(num_tiles,),
        in_specs=in_specs,
        out_specs=pl.BlockSpec((tb, out_dim), lambda i: (i, 0)),
        out_shape=jax.ShapeDtypeStruct((padded_batch, out_dim), x.dtype),
        compiler_params=pltpu.CompilerParams(
            dimension_semantics=("parallel",),
            vmem_limit_bytes=vmem_limit),
    )(x, *flat_params)
    return out[:batch]


def mlp_forward(x, params, *, fold_layers=True, max_rows_per_step=128 * 1024):
    """Fused MultiLayerPerceptron forward.

    x:      (batch, input_dim) float32 or bfloat16
    params: list of (W, b) with W: (in, out), b: (1, out)
    """
    batch, in_dim = x.shape
    out_dim = params[-1][0].shape[1]
    stream_budget, vmem_limit = _vmem_plan()

    if fold_layers and in_dim <= 128 and 128 % in_dim == 0:
        return _forward_folded_packed(x, params, batch, in_dim, out_dim,
                                      stream_budget, vmem_limit,
                                      max_rows_per_step)
    return _forward_layered(x, params, batch, in_dim, out_dim,
                            stream_budget, vmem_limit, max_rows_per_step)


# ---------------------------------------------------------------------------
# Parameter init + reference
# ---------------------------------------------------------------------------

def init_mlp_params(key, input_dim, embed_dims, output_layer=True):
    """Deterministic init mirroring nn.Linear shapes: (W: (in,out), b: (1,out))."""
    params = []
    d_in = input_dim
    layer_dims = list(embed_dims) + ([1] if output_layer else [])
    for d_out in layer_dims:
        key, kw, kb = jax.random.split(key, 3)
        bound = 1.0 / (d_in ** 0.5)
        w = jax.random.uniform(kw, (d_in, d_out), jnp.float32, -bound, bound)
        b = jax.random.uniform(kb, (1, d_out), jnp.float32, -bound, bound)
        params.append((w, b))
        d_in = d_out
    return params


def mlp_reference(x, params):
    h = x.astype(jnp.float32)
    for w, b in params:
        h = jnp.dot(h, w, precision=jax.lax.Precision.HIGHEST) + b
    return jax.nn.sigmoid(h)


if __name__ == "__main__":
    key = jax.random.PRNGKey(0)
    key, kx = jax.random.split(key)

    batch = 300              # not a multiple of any tile -> exercises padding
    input_dim = 16           # 128 % 16 == 0 -> lane-dense packed fast path
    embed_dims = (32, 16)
    dropout = 0.1            # identity at inference; kept for API parity

    x = jax.random.normal(kx, (batch, input_dim), jnp.float32)
    params = init_mlp_params(key, input_dim, embed_dims, output_layer=True)
    ref = mlp_reference(x, params)

    # Folded, lane-dense packed fast path (default).
    out_folded = jax.block_until_ready(mlp_forward(x, params))
    assert out_folded.shape == (batch, 1), out_folded.shape
    err_folded = float(jnp.max(jnp.abs(out_folded - ref)))
    assert err_folded < 2e-2, f"folded max err {err_folded}"

    # General layered fallback path.
    out_layered = jax.block_until_ready(mlp_forward(x, params, fold_layers=False))
    assert out_layered.shape == (batch, 1), out_layered.shape
    err_layered = float(jnp.max(jnp.abs(out_layered - ref)))
    assert err_layered < 2e-2, f"layered max err {err_layered}"

    # bf16 activation stream (as if the upstream producer emitted bf16):
    # halves the dominant HBM read; compared at a looser tolerance.
    out_bf16 = jax.block_until_ready(mlp_forward(x.astype(jnp.bfloat16), params))
    assert out_bf16.shape == (batch, 1), out_bf16.shape
    err_bf16 = float(jnp.max(jnp.abs(out_bf16.astype(jnp.float32) - ref)))
    assert err_bf16 < 2e-2, f"bf16 max err {err_bf16}"

    print("KERNEL_OK")
</pallas_src>

<mosaic_0001>
module attributes {stable_mosaic.version = 11 : i64} {
  func.func @_folded_packed_kernel(%arg0: i32, %arg1: memref<24x128xf32, #tpu.memory_space<vmem>>, %arg2: memref<128x8xf32, #tpu.memory_space<vmem>>, %arg3: memref<1x8xf32, #tpu.memory_space<vmem>>, %arg4: memref<24x8xf32, #tpu.memory_space<vmem>>) attributes {dimension_semantics = [#tpu.dimension_semantics<parallel>], iteration_bounds = array<i64: 2>, scalar_prefetch = 0 : i64, scratch_operands = 0 : i64, tpu.core_type = #tpu.core_type<tc>, window_params = [{transform_indices = @transform_0, window_bounds = array<i64: 24, 128>}, {pipeline_mode = #tpu.pipeline_mode<synchronous>, transform_indices = @transform_1, window_bounds = array<i64: 128, 8>}, {pipeline_mode = #tpu.pipeline_mode<synchronous>, transform_indices = @transform_2, window_bounds = array<i64: 1, 8>}, {transform_indices = @transform_3, window_bounds = array<i64: 24, 8>}]} {
    %c0 = arith.constant 0 : index
    %c0_0 = arith.constant 0 : index
    %0 = vector.load %arg1[%c0, %c0_0] : memref<24x128xf32, #tpu.memory_space<vmem>>, vector<24x128xf32>
    %c0_1 = arith.constant 0 : index
    %c0_2 = arith.constant 0 : index
    %1 = vector.load %arg2[%c0_1, %c0_2] : memref<128x8xf32, #tpu.memory_space<vmem>>, vector<128x8xf32>
    %cst = arith.constant dense<0.000000e+00> : vector<24x8xf32>
    %2 = tpu.matmul %0, %1, %cst {dimension_numbers = #tpu.dot_dimension_numbers<[1], [0], [0], [1], [0, 0, 1, 1], [], []>} : vector<24x128xf32>, vector<128x8xf32>, vector<24x8xf32> -> vector<24x8xf32>
    %c0_3 = arith.constant 0 : index
    %c0_4 = arith.constant 0 : index
    %3 = vector.load %arg3[%c0_3, %c0_4] : memref<1x8xf32, #tpu.memory_space<vmem>>, vector<1x8xf32>
    %4 = vector.broadcast %3 : vector<1x8xf32> to vector<24x8xf32>
    %5 = arith.addf %2, %4 : vector<24x8xf32>
    %6 = arith.negf %5 : vector<24x8xf32>
    %7 = math.exp %6 : vector<24x8xf32>
    %cst_5 = arith.constant 1.000000e+00 : f32
    %8 = vector.broadcast %cst_5 : f32 to vector<24x8xf32>
    %9 = arith.addf %8, %7 : vector<24x8xf32>
    %10 = arith.divf %8, %9 : vector<24x8xf32>
    %c0_6 = arith.constant 0 : index
    %c0_7 = arith.constant 0 : index
    %11 = vector.load %arg4[%c0_6, %c0_7] : memref<24x8xf32, #tpu.memory_space<vmem>>, vector<24x8xf32>
    tpu.vector_store %arg4[%c0_6, %c0_7], %10 {strides = array<i32>} : memref<24x8xf32, #tpu.memory_space<vmem>>, vector<24x8xf32>,
    return
  }
  func.func @transform_0(%arg0: i32) -> (i32, i32) {
    %c0_i32 = arith.constant 0 : i32
    %c0_i32_0 = arith.constant 0 : i32
    return %arg0, %c0_i32 : i32, i32
  }
  func.func @transform_1(%arg0: i32) -> (i32, i32) {
    %c0_i32 = arith.constant 0 : i32
    %c0_i32_0 = arith.constant 0 : i32
    %c0_i32_1 = arith.constant 0 : i32
    return %c0_i32, %c0_i32_0 : i32, i32
  }
  func.func @transform_2(%arg0: i32) -> (i32, i32) {
    %c0_i32 = arith.constant 0 : i32
    %c0_i32_0 = arith.constant 0 : i32
    %c0_i32_1 = arith.constant 0 : i32
    return %c0_i32, %c0_i32_0 : i32, i32
  }
  func.func @transform_3(%arg0: i32) -> (i32, i32) {
    %c0_i32 = arith.constant 0 : i32
    %c0_i32_0 = arith.constant 0 : i32
    return %arg0, %c0_i32 : i32, i32
  }
}

</mosaic_0001>

<llo_original>
// kernel: tpu_custom_call.1
$region0: #{tpu_custom_call.1}
  #allocation0 [shape = 'u32[]', space=smem, size = 0x4, offset = 0x4, fixed_abs, tag = 'smem constant byte address 0x4 - core index']
  #allocation1 [shape = 'u32[72,128]{1,0:T(1,128)}', space=vmem, size = 0x9000, scoped, tag = 'internal scratch']
  %s0 = inlined_call_operand.vmem [shape: f32[48,128], index: 0, kind: input, shape index: {}]
  %s1 = inlined_call_operand.vmem [shape: f32[128,8], index: 1, kind: input, shape index: {}]
  %s2 = inlined_call_operand.vmem [shape: f32[1,8], index: 2, kind: input, shape index: {}]
  %s3 = inlined_call_operand.vmem [shape: f32[48,8], index: 3, kind: output, shape index: {}]
  %s4 = sld [smem:[#allocation0]]
  $region45: #{tpu_custom_call.1} parent=0
    _
  %s6 = ssub.s32 1, %s4
  %s7 = scalar_select 0, %s6, %s4
  loop: start=0, step=1, limit=4
  $region2: #{tpu_custom_call.1} parent=0 // loop_pre_header
    _
  $region3: #{tpu_custom_call.1} parent=0 // loop_header
    %s9 = sphi 0, %s13
    %p10 = scmp.ge.s32.totalorder %s9, 4
    %s19 = sphi 0, %s21
    %s22 = sphi 0, %s19
    %s23 = sphi 0, %s22
    %s39 = sphi 0, %s23
    %s43 = sphi 0, %s43
    %s45 = sphi 0, %s43
    %s46 = sphi 0, %s45
    %s60 = sphi 0, %s46
    %s64 = sphi 0, %s64
    %s66 = sphi 0, %s64
    %s67 = sphi 0, %s66
    %s81 = sphi 0, %s67
    %s87 = sphi 0, %s89
    %s90 = sphi 0, %s87
    %s91 = sphi 0, %s90
    %s107 = sphi 0, %s91
  $region4: #{tpu_custom_call.1} parent=0 // loop_header_branch
    %12 = sbr.rel (%p10) target = $region8
  $region5: #{tpu_custom_call.1} parent=0 // loop_body
    %s14 = ssub.s32 %s9, 1
    %s15 = ssub.s32 %s9, 2
    %s16 = sadd.s32 %s9, 1
    %s17 = ssub.s32 %s9, %s16
    %p18 = scmp.eq.s32.totalorder %s17, 0
    %s20 = sadd.s32 %s19, 1
    %s21 = scalar_select %p18, %s19, %s20
    %p24 = pneg %p18
    %p25 = scmp.eq.s32.totalorder %s9, 1
    %p26 = por %p24, %p25
    %p27 = scmp.ne.s32.totalorder %s19, %s22
    %p28 = scmp.eq.s32.totalorder %s9, 0
    %p29 = por %p27, %p28
    %p30 = scmp.ne.s32.totalorder %s19, %s22
    %p31 = scmp.eq.s32.totalorder %s14, 1
    %p32 = por %p30, %p31
    %p33 = scmp.ne.s32.totalorder %s22, %s23
    %p34 = scmp.eq.s32.totalorder %s14, 0
    %p35 = por %p33, %p34
    %p36 = scmp.ne.s32.totalorder %s22, %s23
    %p37 = scmp.eq.s32.totalorder %s15, 1
    %p38 = por %p36, %p37
    %p40 = scmp.ne.s32.totalorder %s23, %s39
    %p41 = scmp.eq.s32.totalorder %s15, 0
    %p42 = por %p40, %p41
    %s44 = sadd.s32 %s43, 1
    %p47 = scmp.eq.s32.totalorder %s9, 1
    %p48 = scmp.ne.s32.totalorder %s43, %s45
    %p49 = scmp.eq.s32.totalorder %s9, 0
    %p50 = por %p48, %p49
    %p51 = scmp.ne.s32.totalorder %s43, %s45
    %p52 = scmp.eq.s32.totalorder %s14, 1
    %p53 = por %p51, %p52
    %p54 = scmp.ne.s32.totalorder %s45, %s46
    %p55 = scmp.eq.s32.totalorder %s14, 0
    %p56 = por %p54, %p55
    %p57 = scmp.ne.s32.totalorder %s45, %s46
    %p58 = scmp.eq.s32.totalorder %s15, 1
    %p59 = por %p57, %p58
    %p61 = scmp.ne.s32.totalorder %s46, %s60
    %p62 = scmp.eq.s32.totalorder %s15, 0
    %p63 = por %p61, %p62
    %s65 = sadd.s32 %s64, 1
    %p68 = scmp.eq.s32.totalorder %s9, 1
    %p69 = scmp.ne.s32.totalorder %s64, %s66
    %p70 = scmp.eq.s32.totalorder %s9, 0
    %p71 = por %p69, %p70
    %p72 = scmp.ne.s32.totalorder %s64, %s66
    %p73 = scmp.eq.s32.totalorder %s14, 1
    %p74 = por %p72, %p73
    %p75 = scmp.ne.s32.totalorder %s66, %s67
    %p76 = scmp.eq.s32.totalorder %s14, 0
    %p77 = por %p75, %p76
    %p78 = scmp.ne.s32.totalorder %s66, %s67
    %p79 = scmp.eq.s32.totalorder %s15, 1
    %p80 = por %p78, %p79
    %p82 = scmp.ne.s32.totalorder %s67, %s81
    %p83 = scmp.eq.s32.totalorder %s15, 0
    %p84 = por %p82, %p83
    %s85 = ssub.s32 %s9, %s16
    %p86 = scmp.eq.s32.totalorder %s85, 0
    %s88 = sadd.s32 %s87, 1
    %s89 = scalar_select %p86, %s87, %s88
    %p92 = pneg %p86
    %p93 = scmp.eq.s32.totalorder %s9, 1
    %p94 = por %p92, %p93
    %p95 = scmp.ne.s32.totalorder %s87, %s90
    %p96 = scmp.eq.s32.totalorder %s9, 0
    %p97 = por %p95, %p96
    %p98 = scmp.ne.s32.totalorder %s87, %s90
    %p99 = scmp.eq.s32.totalorder %s14, 1
    %p100 = por %p98, %p99
    %p101 = scmp.ne.s32.totalorder %s90, %s91
    %p102 = scmp.eq.s32.totalorder %s14, 0
    %p103 = por %p101, %p102
    %p104 = scmp.ne.s32.totalorder %s90, %s91
    %p105 = scmp.eq.s32.totalorder %s15, 1
    %p106 = por %p104, %p105
    %p108 = scmp.ne.s32.totalorder %s91, %s107
    %p109 = scmp.eq.s32.totalorder %s15, 0
    %p110 = por %p108, %p109
    %p111 = scmp.le.s32.totalorder 1, %s9
    %p112 = scmp.lt.s32.totalorder %s9, 3
    %p113 = pnand %p111, %p112
    %p114 = pneg %p113
    // Predicated region
    $region9: #{tpu_custom_call.1} parent=5 // pred_check
      _
    $region10: #{tpu_custom_call.1} parent=5 // pred_check_branch
      %116 = sbr.rel (%p113) target = $region12
    $region11: #{tpu_custom_call.1} parent=5 // pred_region
      %s117 = ssub.s32 %s9, 1
      // Predicated region
      $region13: #{tpu_custom_call.1} parent=11 // pred_check
        %p118 = pneg %p56
      $region14: #{tpu_custom_call.1} parent=11 // pred_check_branch
        %120 = sbr.rel (%p118) target = $region16
      $region15: #{tpu_custom_call.1} parent=11 // pred_region
        _
      $region16: #{tpu_custom_call.1} parent=11 // pred_fallthru
        _
      // Predicated region
      $region17: #{tpu_custom_call.1} parent=11 // pred_check
        %p121 = pneg %p77
      $region18: #{tpu_custom_call.1} parent=11 // pred_check_branch
        %123 = sbr.rel (%p121) target = $region20
      $region19: #{tpu_custom_call.1} parent=11 // pred_region
        _
      $region20: #{tpu_custom_call.1} parent=11 // pred_fallthru
        _
    $region12: #{tpu_custom_call.1} parent=5 // pred_fallthru
      _
    %p124 = scmp.lt.s32.totalorder %s9, 2
    // Predicated region
    $region21: #{tpu_custom_call.1} parent=5 // pred_check
      %p125 = pneg %p124
    $region22: #{tpu_custom_call.1} parent=5 // pred_check_branch
      %127 = sbr.rel (%p125) target = $region24
    $region23: #{tpu_custom_call.1} parent=5 // pred_region
      // Predicated region
      $region25: #{tpu_custom_call.1} parent=23 // pred_check
        %p128 = pneg %p29
      $region26: #{tpu_custom_call.1} parent=23 // pred_check_branch
        %130 = sbr.rel (%p128) target = $region28
      $region27: #{tpu_custom_call.1} parent=23 // pred_region
        %s131 = smul.u32 3, %s9
        %p132 = scmp.lt.s32.totalorder %s131, 5
        %s133 = scalar_select %p132, %s131, 5
        %s134 = smul.addr %s133, 8
        %s135 = scalar_lea.vmem %s0, %s134
        %s136 = smul.u32 3, %s9
      $region28: #{tpu_custom_call.1} parent=23 // pred_fallthru
        _
    $region24: #{tpu_custom_call.1} parent=5 // pred_fallthru
      _
    %p137 = scmp.le.s32.totalorder 1, %s9
    %p138 = scmp.lt.s32.totalorder %s9, 3
    %p139 = pnand %p137, %p138
    %p140 = pneg %p139
    // Predicated region
    $region29: #{tpu_custom_call.1} parent=5 // pred_check
      _
    $region30: #{tpu_custom_call.1} parent=5 // pred_check_branch
      %142 = sbr.rel (%p139) target = $region32
    $region31: #{tpu_custom_call.1} parent=5 // pred_region
      %s143 = ssub.s32 %s9, 1
      %s144 = smul.u32 3, %s14
      %p145 = scmp.lt.s32.totalorder %s144, 5
      %s146 = scalar_select %p145, %s144, 5
      %s147 = smul.addr %s146, 8
      %s148 = scalar_lea.vmem %s0, %s147
      %p149 = pneg %p35
      %p150 = pneg %p32
      %p151 = pneg %p56
      %p152 = pneg %p53
      %p153 = pneg %p77
      %p154 = pneg %p74
      %p155 = pneg %p103
      %p156 = pneg %p100
      %s157 = smul.u32 3, %s14
      %p158 = scmp.lt.s32.totalorder %s157, 5
      %s159 = scalar_select %p158, %s157, 5
      %s160 = smul.addr %s159, 8
      %s161 = scalar_lea.vmem %s3, %s160
      %s162 = smul.u32 3, %s14
      %p163 = scmp.lt.s32.totalorder %s162, 5
      %s164 = scalar_select %p163, %s162, 5
      %s165 = smul.addr %s164, 8
      %s166 = scalar_lea.vmem %s0, %s165
      %s167 = smul.u32 3, %s14
      %s168 = smul.u32 3, %s14
      %p169 = scmp.lt.s32.totalorder %s168, 5
      %s170 = scalar_select %p169, %s168, 5
      %s171 = smul.addr %s170, 8
      %s172 = scalar_lea.vmem %s3, %s171
      %s173 = smul.u32 3, %s14
      %v174 = vld [vmem:[%s166] sm:$0xff]
      %v175 = vld [vmem:[%s166 + $0x8] sm:$0xff]
      %v176 = vld [vmem:[%s166 + $0x10] sm:$0xff]
      %v177 = vld [vmem:[%s1] sm:$0xff]
      %v178 = vld [vmem:[%s1 + $0x8] sm:$0xff]
      %v179 = vld [vmem:[%s1 + $0x10] sm:$0xff]
      %v180 = vld [vmem:[%s1 + $0x18] sm:$0xff]
      %v181 = vld [vmem:[%s1 + $0x20] sm:$0xff]
      %v182 = vld [vmem:[%s1 + $0x28] sm:$0xff]
      %v183 = vld [vmem:[%s1 + $0x30] sm:$0xff]
      %v184 = vld [vmem:[%s1 + $0x38] sm:$0xff]
      %v185 = vld [vmem:[%s1 + $0x40] sm:$0xff]
      %v186 = vld [vmem:[%s1 + $0x48] sm:$0xff]
      %v187 = vld [vmem:[%s1 + $0x50] sm:$0xff]
      %v188 = vld [vmem:[%s1 + $0x58] sm:$0xff]
      %v189 = vld [vmem:[%s1 + $0x60] sm:$0xff]
      %v190 = vld [vmem:[%s1 + $0x68] sm:$0xff]
      %v191 = vld [vmem:[%s1 + $0x70] sm:$0xff]
      %v192 = vld [vmem:[%s1 + $0x78] sm:$0xff]
      %v193 = vld [vmem:[%s2] sm:$0x1]
      %v195 = vperm.slane %v193, 0
      %197 = vmatpush.msra.mxu0 %v192
      %198 = vmatpush.msra.mxu0 %v191
      %199 = vmatpush.msra.mxu0 %v190
      %200 = vmatpush.msra.mxu0 %v189
      %201 = vmatpush.msra.mxu0 %v188
      %202 = vmatpush.msra.mxu0 %v187
      %203 = vmatpush.msra.mxu0 %v186
      %204 = vmatpush.msra.mxu0 %v185
      %205 = vmatpush.msra.mxu0 %v184
      %206 = vmatpush.msra.mxu0 %v183
      %207 = vmatpush.msra.mxu0 %v182
      %208 = vmatpush.msra.mxu0 %v181
      %209 = vmatpush.msra.mxu0 %v180
      %210 = vmatpush.msra.mxu0 %v179
      %211 = vmatpush.msra.mxu0 %v178
      %212 = vmatpush.msra.mxu0 %v177
      %213 = vmatmul.f32.gmra.mxu0 %v174
      %v214 = vpop.f32.mrf.mxu0
      %v215 = vadd.f32 %v195, %v214
      %216 = vmatmul.f32.gmra.mxu0 %v175
      %v217 = vpop.f32.mrf.mxu0
      %v218 = vadd.f32 %v195, %v217
      %219 = vmatmul.f32.gmra.mxu0 %v176
      %v220 = vpop.f32.mrf.mxu0
      %v221 = vadd.f32 %v195, %v220
      %222 = vdwg.mxu0
      %v223 = vxor.u32 %v215, 2147483648
      %v224 = vxor.u32 %v218, 2147483648
      %v225 = vxor.u32 %v221, 2147483648
      %v226 = vmul.f32 %v223, 1.442695
      %v227 = vpow.pop %v226
      %v228 = vmul.f32 %v224, 1.442695
      %v229 = vpow.pop %v228
      %v230 = vmul.f32 %v225, 1.442695
      %v231 = vpow.pop %v230
      %v232 = vadd.f32 %v227, 1.0
      %v233 = vadd.f32 %v229, 1.0
      %v234 = vadd.f32 %v231, 1.0
      %v235 = vrcp.pop %v232
      %v236 = vmul.f32 %v232, %v235
      %v237 = vsub.f32 1.0, %v236
      %v238 = vmul.f32 %v235, %v237
      %v239 = vadd.f32 %v235, %v238
      %vm240 = vweird.f32 %v232
      %vm241 = vweird.f32 %v235
      %vm242 = vmor %vm240, %vm241
      %v243 = vsel %vm242, %v235, %v239
      %v244 = vand.u32 2147483647, %v232
      %vm245 = vcmp.eq.f32.partialorder %v244, 8.507059e+37
      %v246 = vand.u32 %v232, 2147483648
      %v247 = vor.u32 1.1754944e-38, %v246
      %v248 = vsel %vm245, %v247, %v243
      %v249 = vmul.f32 1.0, %v248
      %v250 = vrcp.pop %v233
      %v251 = vmul.f32 %v233, %v250
      %v252 = vsub.f32 1.0, %v251
      %v253 = vmul.f32 %v250, %v252
      %v254 = vadd.f32 %v250, %v253
      %vm255 = vweird.f32 %v233
      %vm256 = vweird.f32 %v250
      %vm257 = vmor %vm255, %vm256
      %v258 = vsel %vm257, %v250, %v254
      %v259 = vand.u32 2147483647, %v233
      %vm260 = vcmp.eq.f32.partialorder %v259, 8.507059e+37
      %v261 = vand.u32 %v233, 2147483648
      %v262 = vor.u32 1.1754944e-38, %v261
      %v263 = vsel %vm260, %v262, %v258
      %v264 = vmul.f32 1.0, %v263
      %v265 = vrcp.pop %v234
      %v266 = vmul.f32 %v234, %v265
      %v267 = vsub.f32 1.0, %v266
      %v268 = vmul.f32 %v265, %v267
      %v269 = vadd.f32 %v265, %v268
      %vm270 = vweird.f32 %v234
      %vm271 = vweird.f32 %v265
      %vm272 = vmor %vm270, %vm271
      %v273 = vsel %vm272, %v265, %v269
      %v274 = vand.u32 2147483647, %v234
      %vm275 = vcmp.eq.f32.partialorder %v274, 8.507059e+37
      %v276 = vand.u32 %v234, 2147483648
      %v277 = vor.u32 1.1754944e-38, %v276
      %v278 = vsel %vm275, %v277, %v273
      %v279 = vmul.f32 1.0, %v278
      %vm280 = vcmask 64512
      %281 = vst.msk [vmem:[%s172] sm:$0xff] %vm280, %v249
      %282 = vst.msk [vmem:[%s172 + $0x8] sm:$0xff] %vm280, %v264
      %283 = vst.msk [vmem:[%s172 + $0x10] sm:$0xff] %vm280, %v279
      %s284 = smul.u32 3, %s14
      %p285 = scmp.lt.s32.totalorder %s284, 5
      %s286 = scalar_select %p285, %s284, 5
      %s287 = smul.addr %s286, 8
      %s288 = scalar_lea.vmem %s3, %s287
      // Predicated region
      $region33: #{tpu_custom_call.1} parent=31 // pred_check
        %p289 = pneg %p100
      $region34: #{tpu_custom_call.1} parent=31 // pred_check_branch
        %291 = sbr.rel (%p289) target = $region36
      $region35: #{tpu_custom_call.1} parent=31 // pred_region
        %s292 = smul.u32 3, %s14
      $region36: #{tpu_custom_call.1} parent=31 // pred_fallthru
        _
    $region32: #{tpu_custom_call.1} parent=5 // pred_fallthru
      _
    %p293 = scmp.le.s32.totalorder 2, %s9
    // Predicated region
    $region37: #{tpu_custom_call.1} parent=5 // pred_check
      %p294 = pneg %p293
    $region38: #{tpu_custom_call.1} parent=5 // pred_check_branch
      %296 = sbr.rel (%p294) target = $region40
    $region39: #{tpu_custom_call.1} parent=5 // pred_region
      %s297 = ssub.s32 %s9, 2
      // Predicated region
      $region41: #{tpu_custom_call.1} parent=39 // pred_check
        %p298 = pneg %p106
      $region42: #{tpu_custom_call.1} parent=39 // pred_check_branch
        %300 = sbr.rel (%p298) target = $region44
      $region43: #{tpu_custom_call.1} parent=39 // pred_region
        %s301 = smul.u32 3, %s15
        %p302 = scmp.lt.s32.totalorder %s301, 5
        %s303 = scalar_select %p302, %s301, 5
        %s304 = smul.addr %s303, 8
        %s305 = scalar_lea.vmem %s3, %s304
      $region44: #{tpu_custom_call.1} parent=39 // pred_fallthru
        _
    $region40: #{tpu_custom_call.1} parent=5 // pred_fallthru
      _
  $region6: #{tpu_custom_call.1} parent=0 // loop_footer
    %s13 = sadd.s32 1, %s9
  $region7: #{tpu_custom_call.1} parent=0 // loop_footer_branch
    %8 = sbr.rel target = $region3
  $region8: #{tpu_custom_call.1} parent=0 // loop_exit
    _

</llo_original>
